<compile_context>
chip_gen: v5e
topology: v5e:2x2
jax: 0.10.0
libtpu: 0.0.40
codegen_flags: <defaults>
</compile_context>

<pallas_src>
import functools
import math

import jax
import jax.numpy as jnp
from jax.experimental import pallas as pl
from jax.experimental.pallas import tpu as pltpu

BN_EPS = 1e-5


def _activation(y, activate: str):
    if activate == "ReLU":
        return jnp.maximum(y, 0.0)
    if activate == "Sigmoid":
        return jax.nn.sigmoid(y)
    if activate == "Tanh":
        return jnp.tanh(y)
    raise ValueError(f"unsupported activation: {activate}")


def _fused_decoder_kernel(*refs, n_layers: int, activate: str):
    # refs = (x_ref, w_0, gb_0, w_1, gb_1, ..., w_{L-1}, gb_{L-1}, o_ref)
    # One grid step == one view's full layer stack (statically unrolled).
    x_ref, o_ref = refs[0], refs[-1]
    layer_refs = refs[1:-1]

    h = x_ref[...].astype(jnp.float32)            # (B, D0)
    for i in range(n_layers):
        w_ref = layer_refs[2 * i]                 # (D_in, D_out) bf16
        gb_ref = layer_refs[2 * i + 1]            # (2, D_out)    f32

        # MXU matmul: bf16 inputs, f32 accumulation.
        z = jnp.dot(h.astype(jnp.bfloat16), w_ref[...],
                    preferred_element_type=jnp.float32)
        # Linear bias omitted: under training-mode BN a per-feature constant
        # cancels exactly in (z - mean).

        # BatchNorm1d forward with batch statistics, biased variance,
        # single-pass moments.
        mean = jnp.mean(z, axis=0, keepdims=True)
        msq = jnp.mean(z * z, axis=0, keepdims=True)
        var = jnp.maximum(msq - mean * mean, 0.0)
        zc = z - mean
        y = gb_ref[0:1, :] * zc * jax.lax.rsqrt(var + BN_EPS) + gb_ref[1:2, :]

        h = _activation(y, activate)

    o_ref[...] = h.astype(o_ref.dtype)
    # TODO(synk): BatchNorm running_mean/running_var/num_batches_tracked buffer
    # updates are a training side effect and are not part of the forward value.


def init_decoder_params(key, dims, n_views):
    """Per-layer params stacked over views.

    Returns a list (one entry per layer) of:
      W  : (V, D_in, D_out)  bfloat16, PyTorch Linear init U(-1/sqrt(fan_in), ·),
                             stored transposed (in, out) for x @ W.
      GB : (V, 2, D_out)     float32, row 0 = BN weight (=1), row 1 = BN bias (=0).
    Linear.bias is omitted (exact no-op under training-mode BN).
    """
    params = []
    for i in range(len(dims) - 1):
        key, kw = jax.random.split(key)
        bound = 1.0 / math.sqrt(dims[i])
        w = jax.random.uniform(kw, (n_views, dims[i], dims[i + 1]),
                               jnp.float32, -bound, bound).astype(jnp.bfloat16)
        gamma = jnp.ones((n_views, 1, dims[i + 1]), jnp.float32)
        beta = jnp.zeros((n_views, 1, dims[i + 1]), jnp.float32)
        params.append((w, jnp.concatenate([gamma, beta], axis=1)))
    return params


def decoder_forward(xs, params, activate: str = "ReLU"):
    """Decoder.forward(xs): one fused pallas_call over all views and layers."""
    n_views = len(xs)
    x = jnp.stack(xs, axis=0)                      # (V, B, D0)
    V, B, D0 = x.shape
    n_layers = len(params)
    dims = [D0] + [w.shape[-1] for (w, _) in params]
    out_dim = dims[-1]

    # Rough per-view VMEM sanity check: BN needs full-batch statistics, so the
    # batch axis is never tiled here.  Activations (a few f32 copies of the
    # widest layer) + double-buffered bf16 weights must fit the scoped limit.
    act_bytes = 3 * 4 * B * max(dims)
    par_bytes = 2 * sum(2 * w.shape[1] * w.shape[2] + 4 * 2 * w.shape[2]
                        for (w, _) in params)
    assert act_bytes + par_bytes < 24 * 1024 * 1024, (
        "decoder too large for full-batch VMEM residency; re-derive tiling")
    # TODO(synk): for large batches, add a batch grid axis with sum/sum-of-
    # squares BN accumulators and a pl.when finalize instead of full-batch BN.

    in_specs = [pl.BlockSpec((pl.Squeezed(), B, D0), lambda v: (v, 0, 0))]
    args = [x]
    for (w, gb) in params:
        _, din, dout = w.shape
        in_specs.append(
            pl.BlockSpec((pl.Squeezed(), din, dout), lambda v: (v, 0, 0)))
        in_specs.append(
            pl.BlockSpec((pl.Squeezed(), 2, dout), lambda v: (v, 0, 0)))
        args += [w, gb]

    kernel = functools.partial(_fused_decoder_kernel, n_layers=n_layers,
                               activate=activate)
    out = pl.pallas_call(
        kernel,
        out_shape=jax.ShapeDtypeStruct((V, B, out_dim), jnp.float32),
        grid_spec=pl.GridSpec(
            grid=(V,),
            in_specs=in_specs,
            out_specs=pl.BlockSpec((pl.Squeezed(), B, out_dim),
                                   lambda v: (v, 0, 0)),
        ),
        compiler_params=pltpu.CompilerParams(
            # Views are independent -> shard across TensorCores on v7x.
            dimension_semantics=("parallel",)),
    )(*args)

    return [out[v] for v in range(n_views)]


if __name__ == "__main__":
    key = jax.random.PRNGKey(0)

    # Small decoder: latent 32 -> hidden 128 -> reconstructed 256, 2 views.
    dims = [32, 128, 256]
    n_views = 2
    batch = 8

    key, kp, kx = jax.random.split(key, 3)
    params = init_decoder_params(kp, dims, n_views)
    xkeys = jax.random.split(kx, n_views)
    xs = [jax.random.normal(k, (batch, dims[0]), jnp.float32) for k in xkeys]

    outs = decoder_forward(xs, params, activate="ReLU")
    for o in outs:
        jax.block_until_ready(o)

    assert all(o.shape == (batch, dims[-1]) for o in outs)
    print("KERNEL_OK")
</pallas_src>

<mosaic_0001>
module attributes {stable_mosaic.version = 11 : i64} {
  func.func @_fused_decoder_kernel(%arg0: i32, %arg1: memref<1x8x32xf32, #tpu.memory_space<vmem>>, %arg2: memref<1x32x128xbf16, #tpu.memory_space<vmem>>, %arg3: memref<1x2x128xf32, #tpu.memory_space<vmem>>, %arg4: memref<1x128x256xbf16, #tpu.memory_space<vmem>>, %arg5: memref<1x2x256xf32, #tpu.memory_space<vmem>>, %arg6: memref<1x8x256xf32, #tpu.memory_space<vmem>>) attributes {dimension_semantics = [#tpu.dimension_semantics<parallel>], iteration_bounds = array<i64: 2>, scalar_prefetch = 0 : i64, scratch_operands = 0 : i64, tpu.core_type = #tpu.core_type<tc>, window_params = [{transform_indices = @transform_0, window_bounds = array<i64: 1, 8, 32>}, {transform_indices = @transform_1, window_bounds = array<i64: 1, 32, 128>}, {transform_indices = @transform_2, window_bounds = array<i64: 1, 2, 128>}, {transform_indices = @transform_3, window_bounds = array<i64: 1, 128, 256>}, {transform_indices = @transform_4, window_bounds = array<i64: 1, 2, 256>}, {transform_indices = @transform_5, window_bounds = array<i64: 1, 8, 256>}]} {
    %c0 = arith.constant 0 : index
    %c0_0 = arith.constant 0 : index
    %c0_1 = arith.constant 0 : index
    %0 = vector.load %arg1[%c0, %c0_0, %c0_1] : memref<1x8x32xf32, #tpu.memory_space<vmem>>, vector<1x8x32xf32>
    %1 = vector.shape_cast %0 : vector<1x8x32xf32> to vector<8x32xf32>
    %2 = arith.truncf %1 : vector<8x32xf32> to vector<8x32xbf16>
    %c0_2 = arith.constant 0 : index
    %c0_3 = arith.constant 0 : index
    %c0_4 = arith.constant 0 : index
    %3 = vector.load %arg2[%c0_2, %c0_3, %c0_4] : memref<1x32x128xbf16, #tpu.memory_space<vmem>>, vector<1x32x128xbf16>
    %4 = vector.shape_cast %3 : vector<1x32x128xbf16> to vector<32x128xbf16>
    %cst = arith.constant dense<0.000000e+00> : vector<8x128xf32>
    %5 = tpu.matmul %2, %4, %cst {dimension_numbers = #tpu.dot_dimension_numbers<[1], [0], [0], [1], [0, 0, 1, 1], [], []>} : vector<8x32xbf16>, vector<32x128xbf16>, vector<8x128xf32> -> vector<8x128xf32>
    %cst_5 = arith.constant dense<0.000000e+00> : vector<128xf32>
    %6 = vector.multi_reduction <add>, %5, %cst_5 [0] : vector<8x128xf32> to vector<128xf32>
    %7 = vector.shape_cast %6 : vector<128xf32> to vector<1x128xf32>
    %cst_6 = arith.constant 8.000000e+00 : f32
    %8 = vector.broadcast %cst_6 : f32 to vector<1x128xf32>
    %9 = arith.divf %7, %8 : vector<1x128xf32>
    %10 = arith.mulf %5, %5 : vector<8x128xf32>
    %cst_7 = arith.constant dense<0.000000e+00> : vector<128xf32>
    %11 = vector.multi_reduction <add>, %10, %cst_7 [0] : vector<8x128xf32> to vector<128xf32>
    %12 = vector.shape_cast %11 : vector<128xf32> to vector<1x128xf32>
    %cst_8 = arith.constant 8.000000e+00 : f32
    %13 = vector.broadcast %cst_8 : f32 to vector<1x128xf32>
    %14 = arith.divf %12, %13 : vector<1x128xf32>
    %15 = arith.mulf %9, %9 : vector<1x128xf32>
    %16 = arith.subf %14, %15 : vector<1x128xf32>
    %cst_9 = arith.constant 0.000000e+00 : f32
    %17 = vector.broadcast %cst_9 : f32 to vector<1x128xf32>
    %18 = arith.maximumf %16, %17 : vector<1x128xf32>
    %19 = vector.broadcast %9 : vector<1x128xf32> to vector<8x128xf32>
    %20 = arith.subf %5, %19 : vector<8x128xf32>
    %c0_10 = arith.constant 0 : index
    %c0_11 = arith.constant 0 : index
    %c0_12 = arith.constant 0 : index
    %21 = vector.load %arg3[%c0_10, %c0_11, %c0_12] : memref<1x2x128xf32, #tpu.memory_space<vmem>>, vector<1x1x128xf32>
    %22 = vector.shape_cast %21 : vector<1x1x128xf32> to vector<1x128xf32>
    %23 = vector.broadcast %22 : vector<1x128xf32> to vector<8x128xf32>
    %24 = arith.mulf %23, %20 : vector<8x128xf32>
    %cst_13 = arith.constant 9.99999974E-6 : f32
    %25 = vector.broadcast %cst_13 : f32 to vector<1x128xf32>
    %26 = arith.addf %18, %25 : vector<1x128xf32>
    %27 = math.rsqrt %26 : vector<1x128xf32>
    %28 = vector.broadcast %27 : vector<1x128xf32> to vector<8x128xf32>
    %29 = arith.mulf %24, %28 : vector<8x128xf32>
    %c0_14 = arith.constant 0 : index
    %c1 = arith.constant 1 : index
    %c0_15 = arith.constant 0 : index
    %30 = vector.load %arg3[%c0_14, %c1, %c0_15] : memref<1x2x128xf32, #tpu.memory_space<vmem>>, vector<1x1x128xf32>
    %31 = vector.shape_cast %30 : vector<1x1x128xf32> to vector<1x128xf32>
    %32 = vector.broadcast %31 : vector<1x128xf32> to vector<8x128xf32>
    %33 = arith.addf %29, %32 : vector<8x128xf32>
    %cst_16 = arith.constant 0.000000e+00 : f32
    %34 = vector.broadcast %cst_16 : f32 to vector<8x128xf32>
    %35 = arith.maximumf %33, %34 : vector<8x128xf32>
    %36 = arith.truncf %35 : vector<8x128xf32> to vector<8x128xbf16>
    %c0_17 = arith.constant 0 : index
    %c0_18 = arith.constant 0 : index
    %c0_19 = arith.constant 0 : index
    %37 = vector.load %arg4[%c0_17, %c0_18, %c0_19] : memref<1x128x256xbf16, #tpu.memory_space<vmem>>, vector<1x128x256xbf16>
    %38 = vector.shape_cast %37 : vector<1x128x256xbf16> to vector<128x256xbf16>
    %cst_20 = arith.constant dense<0.000000e+00> : vector<8x256xf32>
    %39 = tpu.matmul %36, %38, %cst_20 {dimension_numbers = #tpu.dot_dimension_numbers<[1], [0], [0], [1], [0, 0, 1, 1], [], []>} : vector<8x128xbf16>, vector<128x256xbf16>, vector<8x256xf32> -> vector<8x256xf32>
    %cst_21 = arith.constant dense<0.000000e+00> : vector<256xf32>
    %40 = vector.multi_reduction <add>, %39, %cst_21 [0] : vector<8x256xf32> to vector<256xf32>
    %41 = vector.shape_cast %40 : vector<256xf32> to vector<1x256xf32>
    %cst_22 = arith.constant 8.000000e+00 : f32
    %42 = vector.broadcast %cst_22 : f32 to vector<1x256xf32>
    %43 = arith.divf %41, %42 : vector<1x256xf32>
    %44 = arith.mulf %39, %39 : vector<8x256xf32>
    %cst_23 = arith.constant dense<0.000000e+00> : vector<256xf32>
    %45 = vector.multi_reduction <add>, %44, %cst_23 [0] : vector<8x256xf32> to vector<256xf32>
    %46 = vector.shape_cast %45 : vector<256xf32> to vector<1x256xf32>
    %cst_24 = arith.constant 8.000000e+00 : f32
    %47 = vector.broadcast %cst_24 : f32 to vector<1x256xf32>
    %48 = arith.divf %46, %47 : vector<1x256xf32>
    %49 = arith.mulf %43, %43 : vector<1x256xf32>
    %50 = arith.subf %48, %49 : vector<1x256xf32>
    %cst_25 = arith.constant 0.000000e+00 : f32
    %51 = vector.broadcast %cst_25 : f32 to vector<1x256xf32>
    %52 = arith.maximumf %50, %51 : vector<1x256xf32>
    %53 = vector.broadcast %43 : vector<1x256xf32> to vector<8x256xf32>
    %54 = arith.subf %39, %53 : vector<8x256xf32>
    %c0_26 = arith.constant 0 : index
    %c0_27 = arith.constant 0 : index
    %c0_28 = arith.constant 0 : index
    %55 = vector.load %arg5[%c0_26, %c0_27, %c0_28] : memref<1x2x256xf32, #tpu.memory_space<vmem>>, vector<1x1x256xf32>
    %56 = vector.shape_cast %55 : vector<1x1x256xf32> to vector<1x256xf32>
    %57 = vector.broadcast %56 : vector<1x256xf32> to vector<8x256xf32>
    %58 = arith.mulf %57, %54 : vector<8x256xf32>
    %cst_29 = arith.constant 9.99999974E-6 : f32
    %59 = vector.broadcast %cst_29 : f32 to vector<1x256xf32>
    %60 = arith.addf %52, %59 : vector<1x256xf32>
    %61 = math.rsqrt %60 : vector<1x256xf32>
    %62 = vector.broadcast %61 : vector<1x256xf32> to vector<8x256xf32>
    %63 = arith.mulf %58, %62 : vector<8x256xf32>
    %c0_30 = arith.constant 0 : index
    %c1_31 = arith.constant 1 : index
    %c0_32 = arith.constant 0 : index
    %64 = vector.load %arg5[%c0_30, %c1_31, %c0_32] : memref<1x2x256xf32, #tpu.memory_space<vmem>>, vector<1x1x256xf32>
    %65 = vector.shape_cast %64 : vector<1x1x256xf32> to vector<1x256xf32>
    %66 = vector.broadcast %65 : vector<1x256xf32> to vector<8x256xf32>
    %67 = arith.addf %63, %66 : vector<8x256xf32>
    %cst_33 = arith.constant 0.000000e+00 : f32
    %68 = vector.broadcast %cst_33 : f32 to vector<8x256xf32>
    %69 = arith.maximumf %67, %68 : vector<8x256xf32>
    %c0_34 = arith.constant 0 : index
    %c0_35 = arith.constant 0 : index
    %c0_36 = arith.constant 0 : index
    %70 = vector.load %arg6[%c0_34, %c0_35, %c0_36] : memref<1x8x256xf32, #tpu.memory_space<vmem>>, vector<1x8x256xf32>
    %71 = vector.shape_cast %70 : vector<1x8x256xf32> to vector<8x256xf32>
    %72 = vector.shape_cast %69 : vector<8x256xf32> to vector<1x8x256xf32>
    tpu.vector_store %arg6[%c0_34, %c0_35, %c0_36], %72 {strides = array<i32>} : memref<1x8x256xf32, #tpu.memory_space<vmem>>, vector<1x8x256xf32>,
    return
  }
  func.func @transform_0(%arg0: i32) -> (i32, i32, i32) {
    %c0_i32 = arith.constant 0 : i32
    %c0_i32_0 = arith.constant 0 : i32
    %c0_i32_1 = arith.constant 0 : i32
    return %arg0, %c0_i32, %c0_i32_0 : i32, i32, i32
  }
  func.func @transform_1(%arg0: i32) -> (i32, i32, i32) {
    %c0_i32 = arith.constant 0 : i32
    %c0_i32_0 = arith.constant 0 : i32
    %c0_i32_1 = arith.constant 0 : i32
    return %arg0, %c0_i32, %c0_i32_0 : i32, i32, i32
  }
  func.func @transform_2(%arg0: i32) -> (i32, i32, i32) {
    %c0_i32 = arith.constant 0 : i32
    %c0_i32_0 = arith.constant 0 : i32
    %c0_i32_1 = arith.constant 0 : i32
    return %arg0, %c0_i32, %c0_i32_0 : i32, i32, i32
  }
  func.func @transform_3(%arg0: i32) -> (i32, i32, i32) {
    %c0_i32 = arith.constant 0 : i32
    %c0_i32_0 = arith.constant 0 : i32
    %c0_i32_1 = arith.constant 0 : i32
    return %arg0, %c0_i32, %c0_i32_0 : i32, i32, i32
  }
  func.func @transform_4(%arg0: i32) -> (i32, i32, i32) {
    %c0_i32 = arith.constant 0 : i32
    %c0_i32_0 = arith.constant 0 : i32
    %c0_i32_1 = arith.constant 0 : i32
    return %arg0, %c0_i32, %c0_i32_0 : i32, i32, i32
  }
  func.func @transform_5(%arg0: i32) -> (i32, i32, i32) {
    %c0_i32 = arith.constant 0 : i32
    %c0_i32_0 = arith.constant 0 : i32
    %c0_i32_1 = arith.constant 0 : i32
    return %arg0, %c0_i32, %c0_i32_0 : i32, i32, i32
  }
}

</mosaic_0001>

<llo_original>
// kernel: tpu_custom_call.1
$region0: #{tpu_custom_call.1}
  #allocation0 [shape = 'u32[]', space=smem, size = 0x4, offset = 0x4, fixed_abs, tag = 'smem constant byte address 0x4 - core index']
  #allocation1 [shape = 'u32[72,128]{1,0:T(1,128)}', space=vmem, size = 0x9000, scoped, tag = 'internal scratch']
  %s0 = inlined_call_operand.hbm [shape: f32[2,8,32], index: 0, kind: input, shape index: {}]
  %s1 = inlined_call_operand.hbm [shape: bf16[2,32,128], index: 1, kind: input, shape index: {}]
  %s2 = inlined_call_operand.hbm [shape: f32[2,2,128], index: 2, kind: input, shape index: {}]
  %s3 = inlined_call_operand.hbm [shape: bf16[2,128,256], index: 3, kind: input, shape index: {}]
  %s4 = inlined_call_operand.hbm [shape: f32[2,2,256], index: 4, kind: input, shape index: {}]
  %s5 = inlined_call_operand.hbm [shape: f32[2,8,256], index: 5, kind: output, shape index: {}]
  %s6 = sld [smem:[#allocation0]]
  $region73: #{tpu_custom_call.1} parent=0
    _
  %s8 = ssub.s32 1, %s6
  %s9 = scalar_select 0, %s8, %s6
  $region1: #{tpu_custom_call.1} parent=0
    #allocation2 [shape = 'u8[8192]{0}', space=vmem, size = 0x2000, scoped, tag = 'input window, operand 0']
    #allocation3 [shape = 's32[2]{0}', space=sflag, size = 0x8, scoped, tag = 'scoped memory for tpu_custom_call.1']
    #allocation4 [shape = 's32[2]{0}', space=sflag, size = 0x8, scoped, tag = 'scoped memory for tpu_custom_call.1']
    #allocation5 [shape = 'u8[16384]{0}', space=vmem, size = 0x4000, scoped, tag = 'input window, operand 1']
    #allocation6 [shape = 's32[2]{0}', space=sflag, size = 0x8, scoped, tag = 'scoped memory for tpu_custom_call.1']
    #allocation7 [shape = 'u8[2048]{0}', space=vmem, size = 0x800, scoped, tag = 'input window, operand 2']
    #allocation8 [shape = 'u8[131072]{0}', space=vmem, size = 0x20000, scoped, tag = 'input window, operand 3']
    #allocation9 [shape = 's32[2]{0}', space=sflag, size = 0x8, scoped, tag = 'scoped memory for tpu_custom_call.1']
    #allocation10 [shape = 'u8[4096]{0}', space=vmem, size = 0x1000, scoped, tag = 'input window, operand 4']
    #allocation11 [shape = 'u8[16384]{0}', space=vmem, size = 0x4000, scoped, tag = 'output window, operand 0']
    %10 = vsyncpa [#allocation3], 0
    %s11 = scalar_lea.sflag [#allocation3], 1
    %12 = vsyncpa %s11, 0
    %13 = vsyncpa [#allocation6], 0
    %s14 = scalar_lea.sflag [#allocation6], 1
    %15 = vsyncpa %s14, 0
    %16 = vsyncpa [#allocation9], 0
    %s17 = scalar_lea.sflag [#allocation9], 1
    %18 = vsyncpa %s17, 0
    %19 = vsyncpa [#allocation4], 0
    %s20 = scalar_lea.sflag [#allocation4], 1
    %21 = vsyncpa %s20, 0
    loop: start=0, step=1, limit=4
    $region2: #{tpu_custom_call.1} parent=1 // loop_pre_header
      _
    $region3: #{tpu_custom_call.1} parent=1 // loop_header
      %s23 = sphi 0, %s27
      %p24 = scmp.ge.s32.totalorder %s23, 4
      %s33 = sphi 0, %s35
      %s36 = sphi 0, %s33
      %s37 = sphi 0, %s36
      %s53 = sphi 0, %s37
      %s59 = sphi 0, %s61
      %s62 = sphi 0, %s59
      %s63 = sphi 0, %s62
      %s79 = sphi 0, %s63
      %s85 = sphi 0, %s87
      %s88 = sphi 0, %s85
      %s89 = sphi 0, %s88
      %s105 = sphi 0, %s89
      %s111 = sphi 0, %s113
      %s114 = sphi 0, %s111
      %s115 = sphi 0, %s114
      %s131 = sphi 0, %s115
      %s137 = sphi 0, %s139
      %s140 = sphi 0, %s137
      %s141 = sphi 0, %s140
      %s157 = sphi 0, %s141
      %s163 = sphi 0, %s165
      %s166 = sphi 0, %s163
      %s167 = sphi 0, %s166
      %s183 = sphi 0, %s167
    $region4: #{tpu_custom_call.1} parent=1 // loop_header_branch
      %26 = sbr.rel (%p24) target = $region8
    $region5: #{tpu_custom_call.1} parent=1 // loop_body
      %s28 = ssub.s32 %s23, 1
      %s29 = ssub.s32 %s23, 2
      %s30 = sadd.s32 %s23, 1
      %s31 = ssub.s32 %s23, %s30
      %p32 = scmp.eq.s32.totalorder %s31, 0
      %s34 = sadd.s32 %s33, 1
      %s35 = scalar_select %p32, %s33, %s34
      %p38 = pneg %p32
      %p39 = scmp.eq.s32.totalorder %s23, 1
      %p40 = por %p38, %p39
      %p41 = scmp.ne.s32.totalorder %s33, %s36
      %p42 = scmp.eq.s32.totalorder %s23, 0
      %p43 = por %p41, %p42
      %p44 = scmp.ne.s32.totalorder %s33, %s36
      %p45 = scmp.eq.s32.totalorder %s28, 1
      %p46 = por %p44, %p45
      %p47 = scmp.ne.s32.totalorder %s36, %s37
      %p48 = scmp.eq.s32.totalorder %s28, 0
      %p49 = por %p47, %p48
      %p50 = scmp.ne.s32.totalorder %s36, %s37
      %p51 = scmp.eq.s32.totalorder %s29, 1
      %p52 = por %p50, %p51
      %p54 = scmp.ne.s32.totalorder %s37, %s53
      %p55 = scmp.eq.s32.totalorder %s29, 0
      %p56 = por %p54, %p55
      %s57 = ssub.s32 %s23, %s30
      %p58 = scmp.eq.s32.totalorder %s57, 0
      %s60 = sadd.s32 %s59, 1
      %s61 = scalar_select %p58, %s59, %s60
      %p64 = pneg %p58
      %p65 = scmp.eq.s32.totalorder %s23, 1
      %p66 = por %p64, %p65
      %p67 = scmp.ne.s32.totalorder %s59, %s62
      %p68 = scmp.eq.s32.totalorder %s23, 0
      %p69 = por %p67, %p68
      %p70 = scmp.ne.s32.totalorder %s59, %s62
      %p71 = scmp.eq.s32.totalorder %s28, 1
      %p72 = por %p70, %p71
      %p73 = scmp.ne.s32.totalorder %s62, %s63
      %p74 = scmp.eq.s32.totalorder %s28, 0
      %p75 = por %p73, %p74
      %p76 = scmp.ne.s32.totalorder %s62, %s63
      %p77 = scmp.eq.s32.totalorder %s29, 1
      %p78 = por %p76, %p77
      %p80 = scmp.ne.s32.totalorder %s63, %s79
      %p81 = scmp.eq.s32.totalorder %s29, 0
      %p82 = por %p80, %p81
      %s83 = ssub.s32 %s23, %s30
      %p84 = scmp.eq.s32.totalorder %s83, 0
      %s86 = sadd.s32 %s85, 1
      %s87 = scalar_select %p84, %s85, %s86
      %p90 = pneg %p84
      %p91 = scmp.eq.s32.totalorder %s23, 1
      %p92 = por %p90, %p91
      %p93 = scmp.ne.s32.totalorder %s85, %s88
      %p94 = scmp.eq.s32.totalorder %s23, 0
      %p95 = por %p93, %p94
      %p96 = scmp.ne.s32.totalorder %s85, %s88
      %p97 = scmp.eq.s32.totalorder %s28, 1
      %p98 = por %p96, %p97
      %p99 = scmp.ne.s32.totalorder %s88, %s89
      %p100 = scmp.eq.s32.totalorder %s28, 0
      %p101 = por %p99, %p100
      %p102 = scmp.ne.s32.totalorder %s88, %s89
      %p103 = scmp.eq.s32.totalorder %s29, 1
      %p104 = por %p102, %p103
      %p106 = scmp.ne.s32.totalorder %s89, %s105
      %p107 = scmp.eq.s32.totalorder %s29, 0
      %p108 = por %p106, %p107
      %s109 = ssub.s32 %s23, %s30
      %p110 = scmp.eq.s32.totalorder %s109, 0
      %s112 = sadd.s32 %s111, 1
      %s113 = scalar_select %p110, %s111, %s112
      %p116 = pneg %p110
      %p117 = scmp.eq.s32.totalorder %s23, 1
      %p118 = por %p116, %p117
      %p119 = scmp.ne.s32.totalorder %s111, %s114
      %p120 = scmp.eq.s32.totalorder %s23, 0
      %p121 = por %p119, %p120
      %p122 = scmp.ne.s32.totalorder %s111, %s114
      %p123 = scmp.eq.s32.totalorder %s28, 1
      %p124 = por %p122, %p123
      %p125 = scmp.ne.s32.totalorder %s114, %s115
      %p126 = scmp.eq.s32.totalorder %s28, 0
      %p127 = por %p125, %p126
      %p128 = scmp.ne.s32.totalorder %s114, %s115
      %p129 = scmp.eq.s32.totalorder %s29, 1
      %p130 = por %p128, %p129
      %p132 = scmp.ne.s32.totalorder %s115, %s131
      %p133 = scmp.eq.s32.totalorder %s29, 0
      %p134 = por %p132, %p133
      %s135 = ssub.s32 %s23, %s30
      %p136 = scmp.eq.s32.totalorder %s135, 0
      %s138 = sadd.s32 %s137, 1
      %s139 = scalar_select %p136, %s137, %s138
      %p142 = pneg %p136
      %p143 = scmp.eq.s32.totalorder %s23, 1
      %p144 = por %p142, %p143
      %p145 = scmp.ne.s32.totalorder %s137, %s140
      %p146 = scmp.eq.s32.totalorder %s23, 0
      %p147 = por %p145, %p146
      %p148 = scmp.ne.s32.totalorder %s137, %s140
      %p149 = scmp.eq.s32.totalorder %s28, 1
      %p150 = por %p148, %p149
      %p151 = scmp.ne.s32.totalorder %s140, %s141
      %p152 = scmp.eq.s32.totalorder %s28, 0
      %p153 = por %p151, %p152
      %p154 = scmp.ne.s32.totalorder %s140, %s141
      %p155 = scmp.eq.s32.totalorder %s29, 1
      %p156 = por %p154, %p155
      %p158 = scmp.ne.s32.totalorder %s141, %s157
      %p159 = scmp.eq.s32.totalorder %s29, 0
      %p160 = por %p158, %p159
      %s161 = ssub.s32 %s23, %s30
      %p162 = scmp.eq.s32.totalorder %s161, 0
      %s164 = sadd.s32 %s163, 1
      %s165 = scalar_select %p162, %s163, %s164
      %p168 = pneg %p162
      %p169 = scmp.eq.s32.totalorder %s23, 1
      %p170 = por %p168, %p169
      %p171 = scmp.ne.s32.totalorder %s163, %s166
      %p172 = scmp.eq.s32.totalorder %s23, 0
      %p173 = por %p171, %p172
      %p174 = scmp.ne.s32.totalorder %s163, %s166
      %p175 = scmp.eq.s32.totalorder %s28, 1
      %p176 = por %p174, %p175
      %p177 = scmp.ne.s32.totalorder %s166, %s167
      %p178 = scmp.eq.s32.totalorder %s28, 0
      %p179 = por %p177, %p178
      %p180 = scmp.ne.s32.totalorder %s166, %s167
      %p181 = scmp.eq.s32.totalorder %s29, 1
      %p182 = por %p180, %p181
      %p184 = scmp.ne.s32.totalorder %s167, %s183
      %p185 = scmp.eq.s32.totalorder %s29, 0
      %p186 = por %p184, %p185
      %p187 = scmp.le.s32.totalorder 1, %s23
      %p188 = scmp.lt.s32.totalorder %s23, 3
      %p189 = pnand %p187, %p188
      %p190 = pneg %p189
      // Predicated region
      $region9: #{tpu_custom_call.1} parent=5 // pred_check
        _
      $region10: #{tpu_custom_call.1} parent=5 // pred_check_branch
        %192 = sbr.rel (%p189) target = $region12
      $region11: #{tpu_custom_call.1} parent=5 // pred_region
        %s193 = ssub.s32 %s23, 1
      $region12: #{tpu_custom_call.1} parent=5 // pred_fallthru
        _
      %p194 = scmp.lt.s32.totalorder %s23, 2
      // Predicated region
      $region13: #{tpu_custom_call.1} parent=5 // pred_check
        %p195 = pneg %p194
      $region14: #{tpu_custom_call.1} parent=5 // pred_check_branch
        %197 = sbr.rel (%p195) target = $region16
      $region15: #{tpu_custom_call.1} parent=5 // pred_region
        // Predicated region
        $region17: #{tpu_custom_call.1} parent=15 // pred_check
          %p198 = pneg %p43
        $region18: #{tpu_custom_call.1} parent=15 // pred_check_branch
          %200 = sbr.rel (%p198) target = $region20
        $region19: #{tpu_custom_call.1} parent=15 // pred_region
          %s201 = sand.u32 %s33, 1
          %s202 = scalar_lea.sflag [#allocation3], %s201
          %s203 = sand.u32 %s33, 1
          %s204 = smul.addr %s203, 8
          %s205 = scalar_lea.vmem [#allocation2], %s204
          %207 = vsyncadd %s202, 0
          %s208 = smul.addr %s23, 8
          %s209 = scalar_lea.hbm %s0, %s208
          %s211 = sshll.u32 %s209, 4
          %s212 = int_to_ptr.hbm [resolvable:$true] %s211
          %s213 = sshll.u32 %s205, 4
          %s214 = int_to_ptr.vmem [resolvable:$true] %s213
          %216 = dma.hbm_to_vmem [thread:$0]  %s212, 128, %s214, %s202
        $region20: #{tpu_custom_call.1} parent=15 // pred_fallthru
          _
        // Predicated region
        $region21: #{tpu_custom_call.1} parent=15 // pred_check
          %p217 = pneg %p69
        $region22: #{tpu_custom_call.1} parent=15 // pred_check_branch
          %219 = sbr.rel (%p217) target = $region24
        $region23: #{tpu_custom_call.1} parent=15 // pred_region
          %s220 = sand.u32 %s23, 1
          %s221 = scalar_lea.sflag [#allocation6], %s220
          %s222 = sand.u32 %s59, 1
          %s223 = smul.addr %s222, 16
          %s224 = scalar_lea.vmem [#allocation5], %s223
          %226 = vsyncadd %s221, 0
          %s227 = smul.addr %s23, 4
          %s228 = smul.addr %s227, 4
          %s229 = scalar_lea.hbm %s1, %s228
          %s230 = sshll.u32 %s229, 4
          %s231 = int_to_ptr.hbm [resolvable:$true] %s230
          %s232 = sshll.u32 %s224, 4
          %s233 = int_to_ptr.vmem [resolvable:$true] %s232
          %238 = dma.hbm_to_vmem [thread:$0]  %s231, 256, %s233, %s221, 64, 64, 4
        $region24: #{tpu_custom_call.1} parent=15 // pred_fallthru
          _
        // Predicated region
        $region25: #{tpu_custom_call.1} parent=15 // pred_check
          %p239 = pneg %p95
        $region26: #{tpu_custom_call.1} parent=15 // pred_check_branch
          %241 = sbr.rel (%p239) target = $region28
        $region27: #{tpu_custom_call.1} parent=15 // pred_region
          %s242 = sand.u32 %s23, 1
          %s243 = scalar_lea.sflag [#allocation6], %s242
          %s244 = sand.u32 %s85, 1
          %s245 = smul.addr %s244, 2
          %s246 = scalar_lea.vmem [#allocation7], %s245
          %248 = vsyncadd %s243, 0
          %s249 = smul.addr %s23, 2
          %s250 = scalar_lea.hbm %s2, %s249
          %s252 = sshll.u32 %s250, 4
          %s253 = int_to_ptr.hbm [resolvable:$true] %s252
          %s254 = sshll.u32 %s246, 4
          %s255 = int_to_ptr.vmem [resolvable:$true] %s254
          %257 = dma.hbm_to_vmem [thread:$0]  %s253, 32, %s255, %s243
        $region28: #{tpu_custom_call.1} parent=15 // pred_fallthru
          _
        // Predicated region
        $region29: #{tpu_custom_call.1} parent=15 // pred_check
          %p258 = pneg %p121
        $region30: #{tpu_custom_call.1} parent=15 // pred_check_branch
          %260 = sbr.rel (%p258) target = $region32
        $region31: #{tpu_custom_call.1} parent=15 // pred_region
          %s261 = sand.u32 %s23, 1
          %s262 = scalar_lea.sflag [#allocation9], %s261
          %s263 = sand.u32 %s111, 1
          %s264 = smul.addr %s263, 128
          %s265 = scalar_lea.vmem [#allocation8], %s264
          %267 = vsyncadd %s262, 0
          %s268 = smul.addr %s23, 32
          %s269 = smul.addr %s268, 4
          %s270 = scalar_lea.hbm %s3, %s269
          %s271 = sshll.u32 %s270, 4
          %s272 = int_to_ptr.hbm [resolvable:$true] %s271
          %s273 = sshll.u32 %s265, 4
          %s274 = int_to_ptr.vmem [resolvable:$true] %s273
          %279 = dma.hbm_to_vmem [thread:$0]  %s272, 2048, %s274, %s262, 128, 128, 8
        $region32: #{tpu_custom_call.1} parent=15 // pred_fallthru
          _
        // Predicated region
        $region33: #{tpu_custom_call.1} parent=15 // pred_check
          %p280 = pneg %p147
        $region34: #{tpu_custom_call.1} parent=15 // pred_check_branch
          %282 = sbr.rel (%p280) target = $region36
        $region35: #{tpu_custom_call.1} parent=15 // pred_region
          %s283 = sand.u32 %s23, 1
          %s284 = scalar_lea.sflag [#allocation9], %s283
          %s285 = sand.u32 %s137, 1
          %s286 = smul.addr %s285, 4
          %s287 = scalar_lea.vmem [#allocation10], %s286
          %289 = vsyncadd %s284, 0
          %s290 = smul.addr %s23, 2
          %s291 = smul.addr %s290, 2
          %s292 = scalar_lea.hbm %s4, %s291
          %s294 = sshll.u32 %s292, 4
          %s295 = int_to_ptr.hbm [resolvable:$true] %s294
          %s296 = sshll.u32 %s287, 4
          %s297 = int_to_ptr.vmem [resolvable:$true] %s296
          %299 = dma.hbm_to_vmem [thread:$0]  %s295, 64, %s297, %s284
        $region36: #{tpu_custom_call.1} parent=15 // pred_fallthru
          _
      $region16: #{tpu_custom_call.1} parent=5 // pred_fallthru
        _
      %p300 = scmp.le.s32.totalorder 1, %s23
      %p301 = scmp.lt.s32.totalorder %s23, 3
      %p302 = pnand %p300, %p301
      %p303 = pneg %p302
      // Predicated region
      $region37: #{tpu_custom_call.1} parent=5 // pred_check
        _
      $region38: #{tpu_custom_call.1} parent=5 // pred_check_branch
        %305 = sbr.rel (%p302) target = $region40
      $region39: #{tpu_custom_call.1} parent=5 // pred_region
        %s306 = ssub.s32 %s23, 1
        %s307 = sand.u32 %s36, 1
        %s308 = scalar_lea.sflag [#allocation3], %s307
        %s309 = sand.u32 %s36, 1
        %s310 = smul.addr %s309, 8
        %s311 = scalar_lea.vmem [#allocation2], %s310
        // Predicated region
        $region41: #{tpu_custom_call.1} parent=39 // pred_check
          %p312 = pneg %p49
        $region42: #{tpu_custom_call.1} parent=39 // pred_check_branch
          %314 = sbr.rel (%p312) target = $region44
        $region43: #{tpu_custom_call.1} parent=39 // pred_region
          %316 = dma.done %s308, 128
        $region44: #{tpu_custom_call.1} parent=39 // pred_fallthru
          _
        %s317 = sand.u32 %s28, 1
        %s318 = scalar_lea.sflag [#allocation6], %s317
        %s319 = sand.u32 %s62, 1
        %s320 = smul.addr %s319, 16
        %s321 = scalar_lea.vmem [#allocation5], %s320
        // Predicated region
        $region45: #{tpu_custom_call.1} parent=39 // pred_check
          %p322 = pneg %p75
        $region46: #{tpu_custom_call.1} parent=39 // pred_check_branch
          %324 = sbr.rel (%p322) target = $region48
        $region47: #{tpu_custom_call.1} parent=39 // pred_region
          %326 = dma.done %s318, 256
        $region48: #{tpu_custom_call.1} parent=39 // pred_fallthru
          _
        %s327 = sand.u32 %s28, 1
        %s328 = scalar_lea.sflag [#allocation6], %s327
        %s329 = sand.u32 %s88, 1
        %s330 = smul.addr %s329, 2
        %s331 = scalar_lea.vmem [#allocation7], %s330
        // Predicated region
        $region49: #{tpu_custom_call.1} parent=39 // pred_check
          %p332 = pneg %p101
        $region50: #{tpu_custom_call.1} parent=39 // pred_check_branch
          %334 = sbr.rel (%p332) target = $region52
        $region51: #{tpu_custom_call.1} parent=39 // pred_region
          %336 = dma.done %s328, 32
        $region52: #{tpu_custom_call.1} parent=39 // pred_fallthru
          _
        %s337 = sand.u32 %s28, 1
        %s338 = scalar_lea.sflag [#allocation9], %s337
        %s339 = sand.u32 %s114, 1
        %s340 = smul.addr %s339, 128
        %s341 = scalar_lea.vmem [#allocation8], %s340
        // Predicated region
        $region53: #{tpu_custom_call.1} parent=39 // pred_check
          %p342 = pneg %p127
        $region54: #{tpu_custom_call.1} parent=39 // pred_check_branch
          %344 = sbr.rel (%p342) target = $region56
        $region55: #{tpu_custom_call.1} parent=39 // pred_region
          %346 = dma.done %s338, 2048
        $region56: #{tpu_custom_call.1} parent=39 // pred_fallthru
          _
        %s347 = sand.u32 %s28, 1
        %s348 = scalar_lea.sflag [#allocation9], %s347
        %s349 = sand.u32 %s140, 1
        %s350 = smul.addr %s349, 4
        %s351 = scalar_lea.vmem [#allocation10], %s350
        // Predicated region
        $region57: #{tpu_custom_call.1} parent=39 // pred_check
          %p352 = pneg %p153
        $region58: #{tpu_custom_call.1} parent=39 // pred_check_branch
          %354 = sbr.rel (%p352) target = $region60
        $region59: #{tpu_custom_call.1} parent=39 // pred_region
          %356 = dma.done %s348, 64
        $region60: #{tpu_custom_call.1} parent=39 // pred_fallthru
          _
        %s357 = sand.u32 %s36, 1
        %s358 = scalar_lea.sflag [#allocation3], %s357
        %s359 = sand.u32 %s36, 1
        %s360 = smul.addr %s359, 8
        %s361 = scalar_lea.vmem [#allocation2], %s360
        %p362 = pneg %p49
        %p363 = pneg %p46
        %s364 = sand.u32 %s28, 1
        %s365 = scalar_lea.sflag [#allocation6], %s364
        %s366 = sand.u32 %s62, 1
        %s367 = smul.addr %s366, 16
        %s368 = scalar_lea.vmem [#allocation5], %s367
        %p369 = pneg %p75
        %p370 = pneg %p72
        %s371 = sand.u32 %s28, 1
        %s372 = scalar_lea.sflag [#allocation6], %s371
        %s373 = sand.u32 %s88, 1
        %s374 = smul.addr %s373, 2
        %s375 = scalar_lea.vmem [#allocation7], %s374
        %p376 = pneg %p101
        %p377 = pneg %p98
        %s378 = sand.u32 %s28, 1
        %s379 = scalar_lea.sflag [#allocation9], %s378
        %s380 = sand.u32 %s114, 1
        %s381 = smul.addr %s380, 128
        %s382 = scalar_lea.vmem [#allocation8], %s381
        %p383 = pneg %p127
        %p384 = pneg %p124
        %s385 = sand.u32 %s28, 1
        %s386 = scalar_lea.sflag [#allocation9], %s385
        %s387 = sand.u32 %s140, 1
        %s388 = smul.addr %s387, 4
        %s389 = scalar_lea.vmem [#allocation10], %s388
        %p390 = pneg %p153
        %p391 = pneg %p150
        %p392 = pneg %p179
        %p393 = pneg %p176
        %s394 = sand.u32 %s166, 1
        %s395 = scalar_lea.sflag [#allocation4], %s394
        %s396 = sand.u32 %s166, 1
        %s397 = smul.addr %s396, 16
        %s398 = scalar_lea.vmem [#allocation11], %s397
        %v400 = vld [vmem:[%s311] sm:$0xff]
        %v401 = vpack.c.bf16 %v400, %v400
        %v402 = vld [vmem:[%s321] sm:$0xf]
        %v403 = vld [vmem:[%s321 + $0x4] sm:$0xf]
        %v404 = vld [vmem:[%s321 + $0x8] sm:$0xf]
        %v405 = vld [vmem:[%s321 + $0xc] sm:$0xf]
        %v410 = vunpack.c.l.b16 %v402
        %v411 = vunpack.c.l.b16 %v403
        %v412 = vunpack.c.l.b16 %v404
        %v413 = vunpack.c.l.b16 %v405
        %v414 = vpack.c.b16 %v411, %v410
        %v415 = vpack.c.b16 %v413, %v412
        %vm418 = vcmask 261120
        %v420 = vsel %vm418, %v401, 0
        %422 = vmatpush.bf16.msra.mxu0 0
        %423 = vmatpush.bf16.msra.mxu0 0
        %424 = vmatpush.bf16.msra.mxu0 0
        %425 = vmatpush.bf16.msra.mxu0 0
        %426 = vmatpush.bf16.msra.mxu0 0
        %427 = vmatpush.bf16.msra.mxu0 0
        %428 = vmatpush.bf16.msra.mxu0 %v415
        %429 = vmatpush.bf16.msra.mxu0 %v414
        %430 = vmatmul.bf16.gmra.mxu0 %v420
        %v431 = vpop.f32.mrf.mxu0
        %v432 = vadd.f32 0.0, %v431
        %v433 = vpop.f32.mrf.mxu0
        %434 = vdwg.mxu0
        %v435 = vrot.slane %v432, 4
        %v436 = vadd.f32 %v432, %v435
        %v437 = vrot.slane %v436, 2
        %v438 = vadd.f32 %v436, %v437
        %v439 = vrot.slane %v438, 1
        %v440 = vadd.f32 %v438, %v439
        %v441 = vrcp.pop 8.0
        %v442 = vmul.f32 8.0, %v441
        %v443 = vsub.f32 1.0, %v442
        %v444 = vmul.f32 %v441, %v443
        %v445 = vadd.f32 %v441, %v444
        %vm446 = vweird.f32 %v441
        %v447 = vsel %vm446, %v441, %v445
        %v448 = vmul.f32 %v440, %v447
        %v449 = vmul.f32 %v432, %v432
        %v450 = vrot.slane %v449, 4
        %v451 = vadd.f32 %v449, %v450
        %v452 = vrot.slane %v451, 2
        %v453 = vadd.f32 %v451, %v452
        %v454 = vrot.slane %v453, 1
        %v455 = vadd.f32 %v453, %v454
        %v456 = vmul.f32 %v455, %v447
        %v457 = vmul.f32 %v448, %v448
        %v458 = vsub.f32 %v456, %v457
        %v459 = vmax.f32 %v458, 0.0
        %v460 = vsub.f32 %v432, %v448
        %v461 = vld [vmem:[%s331] sm:$0x1]
        %v462 = vperm.slane %v461, 0
        %v463 = vmul.f32 %v462, %v460
        %v464 = vadd.f32 %v459, 1e-05
        %v465 = vrsqrt.pop %v464
        %v466 = vmul.f32 %v465, %v464
        %v467 = vmul.f32 %v466, %v465
        %v468 = vmul.f32 0.5, %v467
        %v469 = vsub.f32 1.5, %v468
        %v470 = vmul.f32 %v465, %v469
        %vm471 = vweird.f32 %v464
        %vm472 = vweird.f32 %v465
        %vm473 = vmor %vm471, %vm472
        %v474 = vsel %vm473, %v465, %v470
        %v475 = vmul.f32 %v463, %v474
        %v476 = vld [vmem:[%s331 + $0x1] sm:$0x1]
        %v477 = vperm.slane %v476, 0
        %v478 = vadd.f32 %v475, %v477
        %v479 = vmax.f32 %v478, 0.0
        %v480 = vpack.c.bf16 %v479, %v479
        %v481 = vld [vmem:[%s341] sm:$0xff]
        %v482 = vld [vmem:[%s341 + $0x8] sm:$0xff]
        %v483 = vld [vmem:[%s341 + $0x10] sm:$0xff]
        %v484 = vld [vmem:[%s341 + $0x18] sm:$0xff]
        %v485 = vld [vmem:[%s341 + $0x20] sm:$0xff]
        %v486 = vld [vmem:[%s341 + $0x28] sm:$0xff]
        %v487 = vld [vmem:[%s341 + $0x30] sm:$0xff]
        %v488 = vld [vmem:[%s341 + $0x38] sm:$0xff]
        %v489 = vld [vmem:[%s341 + $0x40] sm:$0xff]
        %v490 = vld [vmem:[%s341 + $0x48] sm:$0xff]
        %v491 = vld [vmem:[%s341 + $0x50] sm:$0xff]
        %v492 = vld [vmem:[%s341 + $0x58] sm:$0xff]
        %v493 = vld [vmem:[%s341 + $0x60] sm:$0xff]
        %v494 = vld [vmem:[%s341 + $0x68] sm:$0xff]
        %v495 = vld [vmem:[%s341 + $0x70] sm:$0xff]
        %v496 = vld [vmem:[%s341 + $0x78] sm:$0xff]
        %v513 = vunpack.c.l.b16 %v481
        %v514 = vunpack.c.h.b16 %v481
        %v515 = vunpack.c.l.b16 %v482
        %v516 = vunpack.c.h.b16 %v482
        %v517 = vunpack.c.l.b16 %v483
        %v518 = vunpack.c.h.b16 %v483
        %v519 = vunpack.c.l.b16 %v484
        %v520 = vunpack.c.h.b16 %v484
        %v521 = vunpack.c.l.b16 %v485
        %v522 = vunpack.c.h.b16 %v485
        %v523 = vunpack.c.l.b16 %v486
        %v524 = vunpack.c.h.b16 %v486
        %v525 = vunpack.c.l.b16 %v487
        %v526 = vunpack.c.h.b16 %v487
        %v527 = vunpack.c.l.b16 %v488
        %v528 = vunpack.c.h.b16 %v488
        %v529 = vunpack.c.l.b16 %v489
        %v530 = vunpack.c.h.b16 %v489
        %v531 = vunpack.c.l.b16 %v490
        %v532 = vunpack.c.h.b16 %v490
        %v533 = vunpack.c.l.b16 %v491
        %v534 = vunpack.c.h.b16 %v491
        %v535 = vunpack.c.l.b16 %v492
        %v536 = vunpack.c.h.b16 %v492
        %v537 = vunpack.c.l.b16 %v493
        %v538 = vunpack.c.h.b16 %v493
        %v539 = vunpack.c.l.b16 %v494
        %v540 = vunpack.c.h.b16 %v494
        %v541 = vunpack.c.l.b16 %v495
        %v542 = vunpack.c.h.b16 %v495
        %v543 = vunpack.c.l.b16 %v496
        %v544 = vunpack.c.h.b16 %v496
        %v545 = vpack.c.b16 %v515, %v513
        %v546 = vpack.c.b16 %v516, %v514
        %v547 = vpack.c.b16 %v519, %v517
        %v548 = vpack.c.b16 %v520, %v518
        %v549 = vpack.c.b16 %v523, %v521
        %v550 = vpack.c.b16 %v524, %v522
        %v551 = vpack.c.b16 %v527, %v525
        %v552 = vpack.c.b16 %v528, %v526
        %v553 = vpack.c.b16 %v531, %v529
        %v554 = vpack.c.b16 %v532, %v530
        %v555 = vpack.c.b16 %v535, %v533
        %v556 = vpack.c.b16 %v536, %v534
        %v557 = vpack.c.b16 %v539, %v537
        %v558 = vpack.c.b16 %v540, %v538
        %v559 = vpack.c.b16 %v543, %v541
        %v560 = vpack.c.b16 %v544, %v542
        %577 = vmatpush.bf16.msra.mxu0 %v559
        %578 = vmatpush.bf16.msra.mxu0 %v557
        %579 = vmatpush.bf16.msra.mxu0 %v555
        %580 = vmatpush.bf16.msra.mxu0 %v553
        %581 = vmatpush.bf16.msra.mxu0 %v551
        %582 = vmatpush.bf16.msra.mxu0 %v549
        %583 = vmatpush.bf16.msra.mxu0 %v547
        %584 = vmatpush.bf16.msra.mxu0 %v545
        %585 = vmatmul.bf16.gmra.mxu0 %v480
        %v586 = vpop.f32.mrf.mxu0
        %v587 = vadd.f32 0.0, %v586
        %v588 = vpop.f32.mrf.mxu0
        %589 = vdwg.mxu0
        %590 = vmatpush.bf16.msra.mxu0 %v560
        %591 = vmatpush.bf16.msra.mxu0 %v558
        %592 = vmatpush.bf16.msra.mxu0 %v556
        %593 = vmatpush.bf16.msra.mxu0 %v554
        %594 = vmatpush.bf16.msra.mxu0 %v552
        %595 = vmatpush.bf16.msra.mxu0 %v550
        %596 = vmatpush.bf16.msra.mxu0 %v548
        %597 = vmatpush.bf16.msra.mxu0 %v546
        %598 = vmatmul.bf16.gmra.mxu0 %v480
        %v599 = vpop.f32.mrf.mxu0
        %v600 = vadd.f32 0.0, %v599
        %v601 = vpop.f32.mrf.mxu0
        %602 = vdwg.mxu0
        %v603 = vrot.slane %v587, 4
        %v604 = vadd.f32 %v587, %v603
        %v605 = vrot.slane %v604, 2
        %v606 = vadd.f32 %v604, %v605
        %v607 = vrot.slane %v606, 1
        %v608 = vadd.f32 %v606, %v607
        %v609 = vrot.slane %v600, 4
        %v610 = vadd.f32 %v600, %v609
        %v611 = vrot.slane %v610, 2
        %v612 = vadd.f32 %v610, %v611
        %v613 = vrot.slane %v612, 1
        %v614 = vadd.f32 %v612, %v613
        %v615 = vmul.f32 %v608, %v447
        %v616 = vmul.f32 %v614, %v447
        %v617 = vmul.f32 %v587, %v587
        %v618 = vmul.f32 %v600, %v600
        %v619 = vrot.slane %v617, 4
        %v620 = vadd.f32 %v617, %v619
        %v621 = vrot.slane %v620, 2
        %v622 = vadd.f32 %v620, %v621
        %v623 = vrot.slane %v622, 1
        %v624 = vadd.f32 %v622, %v623
        %v625 = vrot.slane %v618, 4
        %v626 = vadd.f32 %v618, %v625
        %v627 = vrot.slane %v626, 2
        %v628 = vadd.f32 %v626, %v627
        %v629 = vrot.slane %v628, 1
        %v630 = vadd.f32 %v628, %v629
        %v631 = vmul.f32 %v624, %v447
        %v632 = vmul.f32 %v630, %v447
        %v633 = vmul.f32 %v615, %v615
        %v634 = vmul.f32 %v616, %v616
        %v635 = vsub.f32 %v631, %v633
        %v636 = vsub.f32 %v632, %v634
        %v637 = vmax.f32 %v635, 0.0
        %v638 = vmax.f32 %v636, 0.0
        %v639 = vsub.f32 %v587, %v615
        %v640 = vsub.f32 %v600, %v616
        %v641 = vld [vmem:[%s351] ss:$2 sm:$0x3]
        %v643 = vperm.slane %v641, 0
        %v644 = vperm.slane %v641, 1
        %v647 = vmul.f32 %v643, %v639
        %v648 = vmul.f32 %v644, %v640
        %v649 = vadd.f32 %v637, 1e-05
        %v650 = vadd.f32 %v638, 1e-05
        %v651 = vrsqrt.pop %v649
        %v652 = vmul.f32 %v651, %v649
        %v653 = vmul.f32 %v652, %v651
        %v654 = vmul.f32 0.5, %v653
        %v655 = vsub.f32 1.5, %v654
        %v656 = vmul.f32 %v651, %v655
        %vm657 = vweird.f32 %v649
        %vm658 = vweird.f32 %v651
        %vm659 = vmor %vm657, %vm658
        %v660 = vsel %vm659, %v651, %v656
        %v661 = vrsqrt.pop %v650
        %v662 = vmul.f32 %v661, %v650
        %v663 = vmul.f32 %v662, %v661
        %v664 = vmul.f32 0.5, %v663
        %v665 = vsub.f32 1.5, %v664
        %v666 = vmul.f32 %v661, %v665
        %vm667 = vweird.f32 %v650
        %vm668 = vweird.f32 %v661
        %vm669 = vmor %vm667, %vm668
        %v670 = vsel %vm669, %v661, %v666
        %v671 = vmul.f32 %v647, %v660
        %v672 = vmul.f32 %v648, %v670
        %s673 = scalar_lea.vmem %s351, 1 [#allocation10]
        %v674 = vld [vmem:[%s673] ss:$2 sm:$0x3]
        %v676 = vperm.slane %v674, 0
        %v677 = vperm.slane %v674, 1
        %v680 = vadd.f32 %v671, %v676
        %v681 = vadd.f32 %v672, %v677
        %v682 = vmax.f32 %v680, 0.0
        %v683 = vmax.f32 %v681, 0.0
        %684 = vst [vmem:[%s398] sm:$0xff] %v682
        %685 = vst [vmem:[%s398 + $0x8] sm:$0xff] %v683
        %s686 = sand.u32 %s166, 1
        %s687 = scalar_lea.sflag [#allocation4], %s686
        %s688 = sand.u32 %s166, 1
        %s689 = smul.addr %s688, 16
        %s690 = scalar_lea.vmem [#allocation11], %s689
        // Predicated region
        $region61: #{tpu_custom_call.1} parent=39 // pred_check
          %p691 = pneg %p176
        $region62: #{tpu_custom_call.1} parent=39 // pred_check_branch
          %693 = sbr.rel (%p691) target = $region64
        $region63: #{tpu_custom_call.1} parent=39 // pred_region
          %695 = vsyncadd %s687, 0
          %s696 = smul.addr %s28, 2
          %s697 = smul.addr %s696, 8
          %s698 = scalar_lea.hbm %s5, %s697
          %s700 = sshll.u32 %s690, 4
          %s701 = int_to_ptr.vmem [resolvable:$true] %s700
          %s702 = sshll.u32 %s698, 4
          %s703 = int_to_ptr.hbm [resolvable:$true] %s702
          %705 = dma.vmem_to_hbm [thread:$0]  %s701, 256, %s703, %s687
        $region64: #{tpu_custom_call.1} parent=39 // pred_fallthru
          _
      $region40: #{tpu_custom_call.1} parent=5 // pred_fallthru
        _
      %p706 = scmp.le.s32.totalorder 2, %s23
      // Predicated region
      $region65: #{tpu_custom_call.1} parent=5 // pred_check
        %p707 = pneg %p706
      $region66: #{tpu_custom_call.1} parent=5 // pred_check_branch
        %709 = sbr.rel (%p707) target = $region68
      $region67: #{tpu_custom_call.1} parent=5 // pred_region
        %s710 = ssub.s32 %s23, 2
        // Predicated region
        $region69: #{tpu_custom_call.1} parent=67 // pred_check
          %p711 = pneg %p182
        $region70: #{tpu_custom_call.1} parent=67 // pred_check_branch
          %713 = sbr.rel (%p711) target = $region72
        $region71: #{tpu_custom_call.1} parent=67 // pred_region
          %s714 = sand.u32 %s167, 1
          %s715 = scalar_lea.sflag [#allocation4], %s714
          %s716 = sand.u32 %s167, 1
          %s717 = smul.addr %s716, 16
          %s718 = scalar_lea.vmem [#allocation11], %s717
          %720 = dma.done %s715, 256
        $region72: #{tpu_custom_call.1} parent=67 // pred_fallthru
          _
      $region68: #{tpu_custom_call.1} parent=5 // pred_fallthru
        _
    $region6: #{tpu_custom_call.1} parent=1 // loop_footer
      %s27 = sadd.s32 1, %s23
    $region7: #{tpu_custom_call.1} parent=1 // loop_footer_branch
      %22 = sbr.rel target = $region3
    $region8: #{tpu_custom_call.1} parent=1 // loop_exit
      _
    %721 = vsyncpa [#allocation3], 1
    %s722 = scalar_lea.sflag [#allocation3], 1
    %723 = vsyncpa %s722, 1
    %724 = vsyncpa [#allocation6], 1
    %s725 = scalar_lea.sflag [#allocation6], 1
    %726 = vsyncpa %s725, 1
    %727 = vsyncpa [#allocation9], 1
    %s728 = scalar_lea.sflag [#allocation9], 1
    %729 = vsyncpa %s728, 1
    %730 = vsyncpa [#allocation4], 1
    %s731 = scalar_lea.sflag [#allocation4], 1
    %732 = vsyncpa %s731, 1

</llo_original>
